<compile_context>
chip_gen: v6e
topology: v6e:2x2x1
jax: 0.10.0
libtpu: 0.0.40
codegen_flags: <defaults>
</compile_context>

<pallas_src>
import jax
import jax.numpy as jnp
from jax import lax
from jax.experimental import pallas as pl
from jax.experimental.pallas import tpu as pltpu


def _pick_row_pack(H, W, max_lanes=1024):
    """Rows-per-lane-row packing factor r (a divisor of H).

    Prefers a lane extent L = r*W >= 128 (dense vregs, unmasked stores), then the best
    utilisation of 128-lane vregs, then the smallest r.
    """
    candidates = [r for r in range(1, H + 1) if H % r == 0 and r * W <= max_lanes]
    if not candidates:
        candidates = [1]

    def score(r):
        L = r * W
        padded = -(-L // 128) * 128
        return (L >= 128, L / padded, -r)

    return max(candidates, key=score)


def _pick_channel_block(C, bytes_per_channel, budget):
    """Largest divisor of C whose (c_blk, H, W) slab stays within `budget` bytes."""
    best = 1
    for c in range(1, C + 1):
        if C % c == 0 and c * bytes_per_channel <= budget:
            best = c
    return best


def _make_dwconv_kernel(W, r, P):
    """3x3 depthwise conv (stride 1, pad 1) on a packed (R, L) = (c_blk*P, r*W) tile."""
    L = r * W

    def kernel(x_ref, w_ref, b_ref, rowid_ref, colid_ref, o_ref):
        # TODO(synk): optional bf16 tap math on v6e/v7x (f32 accumulate); f32 everywhere for now.
        f32 = jnp.float32
        x = x_ref[0, 0].astype(f32)                        # (R, L)
        R = x.shape[0]
        lane = lax.broadcasted_iota(jnp.int32, (R, L), 1)  # packed lane index
        rowid = rowid_ref[...]                             # (R, 1): packed-row id within a channel
        colid = colid_ref[...]                             # (1, L): original column id (lane % W)

        def row_shift(up):
            """x shifted by one image row (up: x[h-1], else x[h+1]); zero at the border."""
            if r == 1 and P == 1:                          # H == 1: only padding above/below
                return jnp.zeros_like(x)
            a = pltpu.roll(x, W if up else L - W, axis=1) if r > 1 else x
            crosses = (lane < W) if up else (lane >= (r - 1) * W)
            if P > 1:
                # Source sits on the neighbouring sublane row (same channel; the border
                # select below guarantees we never read across a channel boundary).
                b = pltpu.roll(a, 1 if up else R - 1, axis=0)
                border = (rowid == 0) if up else (rowid == P - 1)
                cross_val = jnp.where(border, 0.0, b)
                if r == 1:
                    return cross_val
                return jnp.where(crosses, cross_val, a)
            # P == 1: crossing a packed-row boundary IS the image border.
            return jnp.where(crosses, 0.0, a)

        up = row_shift(True)        # x[h-1, w] (0 above the image)
        dn = row_shift(False)       # x[h+1, w] (0 below the image)

        def wt(t):                  # (R, 1) per-channel tap weight, broadcast over lanes
            return w_ref[t, 0].astype(f32)

        # Combine the three vertical taps per column offset first; only these sums need
        # a +-1 column (lane) shift.
        s_l = up * wt(0) + x * wt(3) + dn * wt(6)   # kw=0 taps: s_l[., j] -> out[., j+1]
        s_c = up * wt(1) + x * wt(4) + dn * wt(7)   # kw=1 taps: stays at column j
        s_r = up * wt(2) + x * wt(5) + dn * wt(8)   # kw=2 taps: s_r[., j] -> out[., j-1]

        acc = s_c + b_ref[0].astype(f32)
        acc = acc + jnp.where(colid == 0, 0.0, pltpu.roll(s_l, 1, axis=1))
        acc = acc + jnp.where(colid == W - 1, 0.0, pltpu.roll(s_r, L - 1, axis=1))
        o_ref[0, 0] = acc.astype(o_ref.dtype)

    return kernel


def dwconv(x, weight, bias, stride=1, *, block_bytes=1 << 20,
           vmem_limit_bytes=32 * 1024 * 1024):
    """Depthwise conv2d, kernel 3x3, padding 1, groups == C, bias.  NCHW in / NCHW out.

    x      : (N, C, H, W)
    weight : (C, 1, 3, 3)   (PyTorch depthwise layout, channel multiplier 1)
    bias   : (C,)
    """
    if stride != 1:
        # TODO(synk): stride-2 depthwise path used by some CMT variants is not implemented.
        raise NotImplementedError("Pallas DWCONV kernel implements the stride=1 path.")

    N, C, H, W = x.shape
    itemsize = jnp.dtype(x.dtype).itemsize

    r = _pick_row_pack(H, W)            # image rows packed onto the lane axis
    P = H // r                          # packed rows per channel (sublane rows / channel)
    L = r * W                           # lane extent (>=128 whenever a divisor of H allows)

    c_blk = _pick_channel_block(C, H * W * itemsize, block_bytes)
    CB = C // c_blk                     # channel blocks (grid axis)
    R = c_blk * P                       # sublane rows per block

    # Zero-cost views of the contiguous NCHW buffer: channels fold onto sublanes,
    # packed rows onto lanes.  No transpose / pad / copy in HBM.
    x4 = x.reshape(N, CB, R, L)

    # Tiny parameter tensors (O(9*C*P) elements): per-tap per-sublane-row weights, bias.
    w9 = jnp.transpose(weight.reshape(C, 9), (1, 0))               # (9, C), tap t = kh*3 + kw
    w9r = jnp.repeat(w9, P, axis=1).reshape(9, CB, R, 1)
    b_r = jnp.repeat(bias, P).reshape(CB, R, 1)

    # Static index helpers (no in-kernel integer div/mod): packed-row-within-channel id
    # per sublane row, original column id per lane.
    rowid = jnp.tile(jnp.arange(P, dtype=jnp.int32), c_blk).reshape(R, 1)
    colid = jnp.tile(jnp.arange(W, dtype=jnp.int32), r).reshape(1, L)

    out4 = pl.pallas_call(
        _make_dwconv_kernel(W, r, P),
        out_shape=jax.ShapeDtypeStruct((N, CB, R, L), x.dtype),
        grid=(N, CB),
        in_specs=[
            pl.BlockSpec((1, 1, R, L), lambda n, cb: (n, cb, 0, 0)),
            pl.BlockSpec((9, 1, R, 1), lambda n, cb: (0, cb, 0, 0)),
            pl.BlockSpec((1, R, 1), lambda n, cb: (cb, 0, 0)),
            pl.BlockSpec((R, 1), lambda n, cb: (0, 0)),
            pl.BlockSpec((1, L), lambda n, cb: (0, 0)),
        ],
        out_specs=pl.BlockSpec((1, 1, R, L), lambda n, cb: (n, cb, 0, 0)),
        compiler_params=pltpu.CompilerParams(
            dimension_semantics=("parallel", "parallel"),
            vmem_limit_bytes=vmem_limit_bytes,
        ),
    )(x4, w9r, b_r, rowid, colid)

    return out4.reshape(N, C, H, W)


def _reference(x, weight, bias, stride=1):
    """Pure-JAX reference (lax conv) for verification."""
    C = x.shape[1]
    out = lax.conv_general_dilated(
        x, weight,
        window_strides=(stride, stride),
        padding=((1, 1), (1, 1)),
        feature_group_count=C,
        dimension_numbers=("NCHW", "OIHW", "NCHW"),
    )
    return out + bias.reshape(1, C, 1, 1)


if __name__ == "__main__":
    key = jax.random.PRNGKey(0)

    # Primary small config (module spec): N=2, C=4, 16x16 -> packed tile (8, 128).
    # Second config exercises the whole-image-on-lanes path at a CMT-like 28x28 size.
    for (N, C, H, W) in [(2, 4, 16, 16), (1, 8, 28, 28)]:
        kx, kw_, kb, key = jax.random.split(key, 4)
        x = jax.random.normal(kx, (N, C, H, W), dtype=jnp.float32)
        weight = jax.random.normal(kw_, (C, 1, 3, 3), dtype=jnp.float32) * 0.1
        bias = jax.random.normal(kb, (C,), dtype=jnp.float32) * 0.1

        out = jax.block_until_ready(dwconv(x, weight, bias))
        ref = jax.block_until_ready(_reference(x, weight, bias))
        assert out.shape == ref.shape
        assert jnp.allclose(out, ref, rtol=1e-4, atol=1e-4), \
            f"mismatch vs reference conv at shape {(N, C, H, W)}"

    print("KERNEL_OK")
</pallas_src>

<mosaic_0001>
module attributes {stable_mosaic.version = 11 : i64} {
  func.func @kernel(%arg0: i32, %arg1: i32, %arg2: memref<1x1x8x128xf32, #tpu.memory_space<vmem>>, %arg3: memref<9x1x8x1xf32, #tpu.memory_space<vmem>>, %arg4: memref<1x8x1xf32, #tpu.memory_space<vmem>>, %arg5: memref<8x1xi32, #tpu.memory_space<vmem>>, %arg6: memref<1x128xi32, #tpu.memory_space<vmem>>, %arg7: memref<1x1x8x128xf32, #tpu.memory_space<vmem>>) attributes {dimension_semantics = [#tpu.dimension_semantics<parallel>, #tpu.dimension_semantics<parallel>], iteration_bounds = array<i64: 2, 1>, scalar_prefetch = 0 : i64, scratch_operands = 0 : i64, tpu.core_type = #tpu.core_type<tc>, window_params = [{transform_indices = @transform_0, window_bounds = array<i64: 1, 1, 8, 128>}, {transform_indices = @transform_1, window_bounds = array<i64: 9, 1, 8, 1>}, {transform_indices = @transform_2, window_bounds = array<i64: 1, 8, 1>}, {pipeline_mode = #tpu.pipeline_mode<synchronous>, transform_indices = @transform_3, window_bounds = array<i64: 8, 1>}, {pipeline_mode = #tpu.pipeline_mode<synchronous>, transform_indices = @transform_4, window_bounds = array<i64: 1, 128>}, {transform_indices = @transform_5, window_bounds = array<i64: 1, 1, 8, 128>}]} {
    %c0 = arith.constant 0 : index
    %c0_0 = arith.constant 0 : index
    %c0_1 = arith.constant 0 : index
    %c0_2 = arith.constant 0 : index
    %0 = vector.load %arg2[%c0, %c0_0, %c0_1, %c0_2] : memref<1x1x8x128xf32, #tpu.memory_space<vmem>>, vector<1x1x8x128xf32>
    %1 = vector.shape_cast %0 : vector<1x1x8x128xf32> to vector<8x128xf32>
    %2 = tpu.iota {dimensions = array<i32: 1>} : vector<8x128xi32>
    %c0_3 = arith.constant 0 : index
    %c0_4 = arith.constant 0 : index
    %3 = vector.load %arg5[%c0_3, %c0_4] : memref<8x1xi32, #tpu.memory_space<vmem>>, vector<8x1xi32>
    %c0_5 = arith.constant 0 : index
    %c0_6 = arith.constant 0 : index
    %4 = vector.load %arg6[%c0_5, %c0_6] : memref<1x128xi32, #tpu.memory_space<vmem>>, vector<1x128xi32>
    %c16_i32 = arith.constant 16 : i32
    %5 = tpu.dynamic_rotate %1 by %c16_i32 dim 1 : vector<8x128xf32>, i32 -> vector<8x128xf32>
    %c16_i32_7 = arith.constant 16 : i32
    %6 = vector.broadcast %c16_i32_7 : i32 to vector<8x128xi32>
    %7 = arith.cmpi slt, %2, %6 : vector<8x128xi32>
    %c1_i32 = arith.constant 1 : i32
    %8 = tpu.dynamic_rotate %5 by %c1_i32 dim 0 : vector<8x128xf32>, i32 -> vector<8x128xf32>
    %c0_i32 = arith.constant 0 : i32
    %9 = vector.broadcast %c0_i32 : i32 to vector<8x1xi32>
    %10 = arith.cmpi eq, %3, %9 : vector<8x1xi32>
    %cst = arith.constant 0.000000e+00 : f32
    %11 = vector.shape_cast %10 : vector<8x1xi1> to vector<8x1xi1>
    %12 = vector.broadcast %11 : vector<8x1xi1> to vector<8x128xi1>
    %13 = vector.broadcast %cst : f32 to vector<8x128xf32>
    %14 = arith.select %12, %13, %8 : vector<8x128xi1>, vector<8x128xf32>
    %15 = arith.select %7, %14, %5 : vector<8x128xi1>, vector<8x128xf32>
    %c112_i32 = arith.constant 112 : i32
    %16 = tpu.dynamic_rotate %1 by %c112_i32 dim 1 : vector<8x128xf32>, i32 -> vector<8x128xf32>
    %c112_i32_8 = arith.constant 112 : i32
    %17 = vector.broadcast %c112_i32_8 : i32 to vector<8x128xi32>
    %18 = arith.cmpi sge, %2, %17 : vector<8x128xi32>
    %c7_i32 = arith.constant 7 : i32
    %19 = tpu.dynamic_rotate %16 by %c7_i32 dim 0 : vector<8x128xf32>, i32 -> vector<8x128xf32>
    %c1_i32_9 = arith.constant 1 : i32
    %20 = vector.broadcast %c1_i32_9 : i32 to vector<8x1xi32>
    %21 = arith.cmpi eq, %3, %20 : vector<8x1xi32>
    %cst_10 = arith.constant 0.000000e+00 : f32
    %22 = vector.shape_cast %21 : vector<8x1xi1> to vector<8x1xi1>
    %23 = vector.broadcast %22 : vector<8x1xi1> to vector<8x128xi1>
    %24 = vector.broadcast %cst_10 : f32 to vector<8x128xf32>
    %25 = arith.select %23, %24, %19 : vector<8x128xi1>, vector<8x128xf32>
    %26 = arith.select %18, %25, %16 : vector<8x128xi1>, vector<8x128xf32>
    %c0_11 = arith.constant 0 : index
    %c0_12 = arith.constant 0 : index
    %c0_13 = arith.constant 0 : index
    %c0_14 = arith.constant 0 : index
    %27 = vector.load %arg3[%c0_11, %c0_12, %c0_13, %c0_14] : memref<9x1x8x1xf32, #tpu.memory_space<vmem>>, vector<1x1x8x1xf32>
    %28 = vector.shape_cast %27 : vector<1x1x8x1xf32> to vector<8x1xf32>
    %29 = vector.broadcast %28 : vector<8x1xf32> to vector<8x128xf32>
    %30 = arith.mulf %15, %29 : vector<8x128xf32>
    %c3 = arith.constant 3 : index
    %c0_15 = arith.constant 0 : index
    %c0_16 = arith.constant 0 : index
    %c0_17 = arith.constant 0 : index
    %31 = vector.load %arg3[%c3, %c0_15, %c0_16, %c0_17] : memref<9x1x8x1xf32, #tpu.memory_space<vmem>>, vector<1x1x8x1xf32>
    %32 = vector.shape_cast %31 : vector<1x1x8x1xf32> to vector<8x1xf32>
    %33 = vector.broadcast %32 : vector<8x1xf32> to vector<8x128xf32>
    %34 = arith.mulf %1, %33 : vector<8x128xf32>
    %35 = arith.addf %30, %34 : vector<8x128xf32>
    %c6 = arith.constant 6 : index
    %c0_18 = arith.constant 0 : index
    %c0_19 = arith.constant 0 : index
    %c0_20 = arith.constant 0 : index
    %36 = vector.load %arg3[%c6, %c0_18, %c0_19, %c0_20] : memref<9x1x8x1xf32, #tpu.memory_space<vmem>>, vector<1x1x8x1xf32>
    %37 = vector.shape_cast %36 : vector<1x1x8x1xf32> to vector<8x1xf32>
    %38 = vector.broadcast %37 : vector<8x1xf32> to vector<8x128xf32>
    %39 = arith.mulf %26, %38 : vector<8x128xf32>
    %40 = arith.addf %35, %39 : vector<8x128xf32>
    %c1 = arith.constant 1 : index
    %c0_21 = arith.constant 0 : index
    %c0_22 = arith.constant 0 : index
    %c0_23 = arith.constant 0 : index
    %41 = vector.load %arg3[%c1, %c0_21, %c0_22, %c0_23] : memref<9x1x8x1xf32, #tpu.memory_space<vmem>>, vector<1x1x8x1xf32>
    %42 = vector.shape_cast %41 : vector<1x1x8x1xf32> to vector<8x1xf32>
    %43 = vector.broadcast %42 : vector<8x1xf32> to vector<8x128xf32>
    %44 = arith.mulf %15, %43 : vector<8x128xf32>
    %c4 = arith.constant 4 : index
    %c0_24 = arith.constant 0 : index
    %c0_25 = arith.constant 0 : index
    %c0_26 = arith.constant 0 : index
    %45 = vector.load %arg3[%c4, %c0_24, %c0_25, %c0_26] : memref<9x1x8x1xf32, #tpu.memory_space<vmem>>, vector<1x1x8x1xf32>
    %46 = vector.shape_cast %45 : vector<1x1x8x1xf32> to vector<8x1xf32>
    %47 = vector.broadcast %46 : vector<8x1xf32> to vector<8x128xf32>
    %48 = arith.mulf %1, %47 : vector<8x128xf32>
    %49 = arith.addf %44, %48 : vector<8x128xf32>
    %c7 = arith.constant 7 : index
    %c0_27 = arith.constant 0 : index
    %c0_28 = arith.constant 0 : index
    %c0_29 = arith.constant 0 : index
    %50 = vector.load %arg3[%c7, %c0_27, %c0_28, %c0_29] : memref<9x1x8x1xf32, #tpu.memory_space<vmem>>, vector<1x1x8x1xf32>
    %51 = vector.shape_cast %50 : vector<1x1x8x1xf32> to vector<8x1xf32>
    %52 = vector.broadcast %51 : vector<8x1xf32> to vector<8x128xf32>
    %53 = arith.mulf %26, %52 : vector<8x128xf32>
    %54 = arith.addf %49, %53 : vector<8x128xf32>
    %c2 = arith.constant 2 : index
    %c0_30 = arith.constant 0 : index
    %c0_31 = arith.constant 0 : index
    %c0_32 = arith.constant 0 : index
    %55 = vector.load %arg3[%c2, %c0_30, %c0_31, %c0_32] : memref<9x1x8x1xf32, #tpu.memory_space<vmem>>, vector<1x1x8x1xf32>
    %56 = vector.shape_cast %55 : vector<1x1x8x1xf32> to vector<8x1xf32>
    %57 = vector.broadcast %56 : vector<8x1xf32> to vector<8x128xf32>
    %58 = arith.mulf %15, %57 : vector<8x128xf32>
    %c5 = arith.constant 5 : index
    %c0_33 = arith.constant 0 : index
    %c0_34 = arith.constant 0 : index
    %c0_35 = arith.constant 0 : index
    %59 = vector.load %arg3[%c5, %c0_33, %c0_34, %c0_35] : memref<9x1x8x1xf32, #tpu.memory_space<vmem>>, vector<1x1x8x1xf32>
    %60 = vector.shape_cast %59 : vector<1x1x8x1xf32> to vector<8x1xf32>
    %61 = vector.broadcast %60 : vector<8x1xf32> to vector<8x128xf32>
    %62 = arith.mulf %1, %61 : vector<8x128xf32>
    %63 = arith.addf %58, %62 : vector<8x128xf32>
    %c8 = arith.constant 8 : index
    %c0_36 = arith.constant 0 : index
    %c0_37 = arith.constant 0 : index
    %c0_38 = arith.constant 0 : index
    %64 = vector.load %arg3[%c8, %c0_36, %c0_37, %c0_38] : memref<9x1x8x1xf32, #tpu.memory_space<vmem>>, vector<1x1x8x1xf32>
    %65 = vector.shape_cast %64 : vector<1x1x8x1xf32> to vector<8x1xf32>
    %66 = vector.broadcast %65 : vector<8x1xf32> to vector<8x128xf32>
    %67 = arith.mulf %26, %66 : vector<8x128xf32>
    %68 = arith.addf %63, %67 : vector<8x128xf32>
    %c0_39 = arith.constant 0 : index
    %c0_40 = arith.constant 0 : index
    %c0_41 = arith.constant 0 : index
    %69 = vector.load %arg4[%c0_39, %c0_40, %c0_41] : memref<1x8x1xf32, #tpu.memory_space<vmem>>, vector<1x8x1xf32>
    %70 = vector.shape_cast %69 : vector<1x8x1xf32> to vector<8x1xf32>
    %71 = vector.broadcast %70 : vector<8x1xf32> to vector<8x128xf32>
    %72 = arith.addf %54, %71 : vector<8x128xf32>
    %c0_i32_42 = arith.constant 0 : i32
    %73 = vector.broadcast %c0_i32_42 : i32 to vector<1x128xi32>
    %74 = arith.cmpi eq, %4, %73 : vector<1x128xi32>
    %c1_i32_43 = arith.constant 1 : i32
    %75 = tpu.dynamic_rotate %40 by %c1_i32_43 dim 1 : vector<8x128xf32>, i32 -> vector<8x128xf32>
    %cst_44 = arith.constant 0.000000e+00 : f32
    %76 = vector.shape_cast %74 : vector<1x128xi1> to vector<1x128xi1>
    %77 = vector.broadcast %76 : vector<1x128xi1> to vector<8x128xi1>
    %78 = vector.broadcast %cst_44 : f32 to vector<8x128xf32>
    %79 = arith.select %77, %78, %75 : vector<8x128xi1>, vector<8x128xf32>
    %80 = arith.addf %72, %79 : vector<8x128xf32>
    %c15_i32 = arith.constant 15 : i32
    %81 = vector.broadcast %c15_i32 : i32 to vector<1x128xi32>
    %82 = arith.cmpi eq, %4, %81 : vector<1x128xi32>
    %c127_i32 = arith.constant 127 : i32
    %83 = tpu.dynamic_rotate %68 by %c127_i32 dim 1 : vector<8x128xf32>, i32 -> vector<8x128xf32>
    %cst_45 = arith.constant 0.000000e+00 : f32
    %84 = vector.shape_cast %82 : vector<1x128xi1> to vector<1x128xi1>
    %85 = vector.broadcast %84 : vector<1x128xi1> to vector<8x128xi1>
    %86 = vector.broadcast %cst_45 : f32 to vector<8x128xf32>
    %87 = arith.select %85, %86, %83 : vector<8x128xi1>, vector<8x128xf32>
    %88 = arith.addf %80, %87 : vector<8x128xf32>
    %c0_46 = arith.constant 0 : index
    %c0_47 = arith.constant 0 : index
    %c0_48 = arith.constant 0 : index
    %c0_49 = arith.constant 0 : index
    %89 = vector.load %arg7[%c0_46, %c0_47, %c0_48, %c0_49] : memref<1x1x8x128xf32, #tpu.memory_space<vmem>>, vector<1x1x8x128xf32>
    %90 = vector.shape_cast %89 : vector<1x1x8x128xf32> to vector<8x128xf32>
    %91 = vector.shape_cast %88 : vector<8x128xf32> to vector<1x1x8x128xf32>
    tpu.vector_store %arg7[%c0_46, %c0_47, %c0_48, %c0_49], %91 {strides = array<i32>} : memref<1x1x8x128xf32, #tpu.memory_space<vmem>>, vector<1x1x8x128xf32>,
    return
  }
  func.func @transform_0(%arg0: i32, %arg1: i32) -> (i32, i32, i32, i32) {
    %c0_i32 = arith.constant 0 : i32
    %c0_i32_0 = arith.constant 0 : i32
    %c0_i32_1 = arith.constant 0 : i32
    return %arg0, %arg1, %c0_i32, %c0_i32_0 : i32, i32, i32, i32
  }
  func.func @transform_1(%arg0: i32, %arg1: i32) -> (i32, i32, i32, i32) {
    %c0_i32 = arith.constant 0 : i32
    %c0_i32_0 = arith.constant 0 : i32
    %c0_i32_1 = arith.constant 0 : i32
    %c0_i32_2 = arith.constant 0 : i32
    return %c0_i32, %arg1, %c0_i32_0, %c0_i32_1 : i32, i32, i32, i32
  }
  func.func @transform_2(%arg0: i32, %arg1: i32) -> (i32, i32, i32) {
    %c0_i32 = arith.constant 0 : i32
    %c0_i32_0 = arith.constant 0 : i32
    %c0_i32_1 = arith.constant 0 : i32
    return %arg1, %c0_i32, %c0_i32_0 : i32, i32, i32
  }
  func.func @transform_3(%arg0: i32, %arg1: i32) -> (i32, i32) {
    %c0_i32 = arith.constant 0 : i32
    %c0_i32_0 = arith.constant 0 : i32
    %c0_i32_1 = arith.constant 0 : i32
    return %c0_i32, %c0_i32_0 : i32, i32
  }
  func.func @transform_4(%arg0: i32, %arg1: i32) -> (i32, i32) {
    %c0_i32 = arith.constant 0 : i32
    %c0_i32_0 = arith.constant 0 : i32
    %c0_i32_1 = arith.constant 0 : i32
    return %c0_i32, %c0_i32_0 : i32, i32
  }
  func.func @transform_5(%arg0: i32, %arg1: i32) -> (i32, i32, i32, i32) {
    %c0_i32 = arith.constant 0 : i32
    %c0_i32_0 = arith.constant 0 : i32
    %c0_i32_1 = arith.constant 0 : i32
    return %arg0, %arg1, %c0_i32, %c0_i32_0 : i32, i32, i32, i32
  }
}

</mosaic_0001>

<llo_original>
// kernel: tpu_custom_call.1
$region0: #{tpu_custom_call.1}
  #allocation0 [shape = 'u32[]', space=smem, size = 0x4, offset = 0x4, fixed_abs, tag = 'smem constant byte address 0x4 - core index']
  #allocation1 [shape = 'u32[144,128]{1,0:T(1,128)}', space=vmem, size = 0x12000, scoped, tag = 'internal scratch']
  %s0 = inlined_call_operand.vmem [shape: f32[2,1,8,128], index: 0, kind: input, shape index: {}]
  %s1 = inlined_call_operand.vmem [shape: f32[9,1,8,1], index: 1, kind: input, shape index: {}]
  %s2 = inlined_call_operand.vmem [shape: f32[1,8,1], index: 2, kind: input, shape index: {}]
  %s3 = inlined_call_operand.vmem [shape: s32[8,1], index: 3, kind: input, shape index: {}]
  %s4 = inlined_call_operand.vmem [shape: s32[1,128], index: 4, kind: input, shape index: {}]
  %s5 = inlined_call_operand.hbm [shape: f32[2,1,8,128], index: 5, kind: output, shape index: {}]
  %s6 = sld [smem:[#allocation0]]
  $region53: #{tpu_custom_call.1} parent=0
    _
  %s8 = ssub.s32 1, %s6
  %s9 = scalar_select 0, %s8, %s6
  $region1: #{tpu_custom_call.1} parent=0
    #allocation2 [shape = 'u8[8192]{0}', space=vmem, size = 0x2000, scoped, tag = 'output window, operand 0']
    #allocation3 [shape = 's32[2]{0}', space=sflag, size = 0x8, scoped, tag = 'scoped memory for tpu_custom_call.1']
    %10 = vsyncpa [#allocation3], 0
    %s11 = scalar_lea.sflag [#allocation3], 1
    %12 = vsyncpa %s11, 0
    loop: start=0, step=1, limit=4
    $region2: #{tpu_custom_call.1} parent=1 // loop_pre_header
      _
    $region3: #{tpu_custom_call.1} parent=1 // loop_header
      %s14 = sphi 0, %s18
      %p15 = scmp.ge.s32.totalorder %s14, 4
      %s21 = sphi 0, %s33
      %s22 = sphi 0, %s29
      %s23 = sphi 0, %s21
      %s24 = sphi 0, %s22
      %s25 = sphi 0, %s23
      %s26 = sphi 0, %s24
      %s38 = sphi 0, %s40
      %s41 = sphi 0, %s38
      %s42 = sphi 0, %s41
      %s58 = sphi 0, %s42
      %s64 = sphi 0, %s66
      %s67 = sphi 0, %s64
      %s68 = sphi 0, %s67
      %s84 = sphi 0, %s68
      %s90 = sphi 0, %s92
      %s93 = sphi 0, %s90
      %s94 = sphi 0, %s93
      %s110 = sphi 0, %s94
      %s114 = sphi 0, %s114
      %s116 = sphi 0, %s114
      %s117 = sphi 0, %s116
      %s131 = sphi 0, %s117
      %s135 = sphi 0, %s135
      %s137 = sphi 0, %s135
      %s138 = sphi 0, %s137
      %s152 = sphi 0, %s138
      %s160 = sphi 0, %s162
      %s163 = sphi 0, %s160
      %s164 = sphi 0, %s163
      %s180 = sphi 0, %s164
    $region4: #{tpu_custom_call.1} parent=1 // loop_header_branch
      %17 = sbr.rel (%p15) target = $region8
    $region5: #{tpu_custom_call.1} parent=1 // loop_body
      %s19 = ssub.s32 %s14, 1
      %s20 = ssub.s32 %s14, 2
      %s27 = sadd.s32 1, %s22
      %p28 = scmp.ge.s32.totalorder %s27, 1
      %s29 = scalar_select %p28, 0, %s27
      %s30 = sadd.s32 1, %s21
      %s31 = scalar_select %p28, %s30, %s21
      %p32 = scmp.ge.s32.totalorder %s31, 2
      %s33 = scalar_select %p32, 0, %s31
      %s34 = ssub.s32 %s21, %s33
      %s35 = ssub.s32 %s22, %s29
      %s36 = sor.u32 %s34, %s35
      %p37 = scmp.eq.s32.totalorder %s36, 0
      %s39 = sadd.s32 %s38, 1
      %s40 = scalar_select %p37, %s38, %s39
      %p43 = pneg %p37
      %p44 = scmp.eq.s32.totalorder %s14, 1
      %p45 = por %p43, %p44
      %p46 = scmp.ne.s32.totalorder %s38, %s41
      %p47 = scmp.eq.s32.totalorder %s14, 0
      %p48 = por %p46, %p47
      %p49 = scmp.ne.s32.totalorder %s38, %s41
      %p50 = scmp.eq.s32.totalorder %s19, 1
      %p51 = por %p49, %p50
      %p52 = scmp.ne.s32.totalorder %s41, %s42
      %p53 = scmp.eq.s32.totalorder %s19, 0
      %p54 = por %p52, %p53
      %p55 = scmp.ne.s32.totalorder %s41, %s42
      %p56 = scmp.eq.s32.totalorder %s20, 1
      %p57 = por %p55, %p56
      %p59 = scmp.ne.s32.totalorder %s42, %s58
      %p60 = scmp.eq.s32.totalorder %s20, 0
      %p61 = por %p59, %p60
      %s62 = ssub.s32 %s22, %s29
      %p63 = scmp.eq.s32.totalorder %s62, 0
      %s65 = sadd.s32 %s64, 1
      %s66 = scalar_select %p63, %s64, %s65
      %p69 = pneg %p63
      %p70 = scmp.eq.s32.totalorder %s14, 1
      %p71 = por %p69, %p70
      %p72 = scmp.ne.s32.totalorder %s64, %s67
      %p73 = scmp.eq.s32.totalorder %s14, 0
      %p74 = por %p72, %p73
      %p75 = scmp.ne.s32.totalorder %s64, %s67
      %p76 = scmp.eq.s32.totalorder %s19, 1
      %p77 = por %p75, %p76
      %p78 = scmp.ne.s32.totalorder %s67, %s68
      %p79 = scmp.eq.s32.totalorder %s19, 0
      %p80 = por %p78, %p79
      %p81 = scmp.ne.s32.totalorder %s67, %s68
      %p82 = scmp.eq.s32.totalorder %s20, 1
      %p83 = por %p81, %p82
      %p85 = scmp.ne.s32.totalorder %s68, %s84
      %p86 = scmp.eq.s32.totalorder %s20, 0
      %p87 = por %p85, %p86
      %s88 = ssub.s32 %s22, %s29
      %p89 = scmp.eq.s32.totalorder %s88, 0
      %s91 = sadd.s32 %s90, 1
      %s92 = scalar_select %p89, %s90, %s91
      %p95 = pneg %p89
      %p96 = scmp.eq.s32.totalorder %s14, 1
      %p97 = por %p95, %p96
      %p98 = scmp.ne.s32.totalorder %s90, %s93
      %p99 = scmp.eq.s32.totalorder %s14, 0
      %p100 = por %p98, %p99
      %p101 = scmp.ne.s32.totalorder %s90, %s93
      %p102 = scmp.eq.s32.totalorder %s19, 1
      %p103 = por %p101, %p102
      %p104 = scmp.ne.s32.totalorder %s93, %s94
      %p105 = scmp.eq.s32.totalorder %s19, 0
      %p106 = por %p104, %p105
      %p107 = scmp.ne.s32.totalorder %s93, %s94
      %p108 = scmp.eq.s32.totalorder %s20, 1
      %p109 = por %p107, %p108
      %p111 = scmp.ne.s32.totalorder %s94, %s110
      %p112 = scmp.eq.s32.totalorder %s20, 0
      %p113 = por %p111, %p112
      %s115 = sadd.s32 %s114, 1
      %p118 = scmp.eq.s32.totalorder %s14, 1
      %p119 = scmp.ne.s32.totalorder %s114, %s116
      %p120 = scmp.eq.s32.totalorder %s14, 0
      %p121 = por %p119, %p120
      %p122 = scmp.ne.s32.totalorder %s114, %s116
      %p123 = scmp.eq.s32.totalorder %s19, 1
      %p124 = por %p122, %p123
      %p125 = scmp.ne.s32.totalorder %s116, %s117
      %p126 = scmp.eq.s32.totalorder %s19, 0
      %p127 = por %p125, %p126
      %p128 = scmp.ne.s32.totalorder %s116, %s117
      %p129 = scmp.eq.s32.totalorder %s20, 1
      %p130 = por %p128, %p129
      %p132 = scmp.ne.s32.totalorder %s117, %s131
      %p133 = scmp.eq.s32.totalorder %s20, 0
      %p134 = por %p132, %p133
      %s136 = sadd.s32 %s135, 1
      %p139 = scmp.eq.s32.totalorder %s14, 1
      %p140 = scmp.ne.s32.totalorder %s135, %s137
      %p141 = scmp.eq.s32.totalorder %s14, 0
      %p142 = por %p140, %p141
      %p143 = scmp.ne.s32.totalorder %s135, %s137
      %p144 = scmp.eq.s32.totalorder %s19, 1
      %p145 = por %p143, %p144
      %p146 = scmp.ne.s32.totalorder %s137, %s138
      %p147 = scmp.eq.s32.totalorder %s19, 0
      %p148 = por %p146, %p147
      %p149 = scmp.ne.s32.totalorder %s137, %s138
      %p150 = scmp.eq.s32.totalorder %s20, 1
      %p151 = por %p149, %p150
      %p153 = scmp.ne.s32.totalorder %s138, %s152
      %p154 = scmp.eq.s32.totalorder %s20, 0
      %p155 = por %p153, %p154
      %s156 = ssub.s32 %s21, %s33
      %s157 = ssub.s32 %s22, %s29
      %s158 = sor.u32 %s156, %s157
      %p159 = scmp.eq.s32.totalorder %s158, 0
      %s161 = sadd.s32 %s160, 1
      %s162 = scalar_select %p159, %s160, %s161
      %p165 = pneg %p159
      %p166 = scmp.eq.s32.totalorder %s14, 1
      %p167 = por %p165, %p166
      %p168 = scmp.ne.s32.totalorder %s160, %s163
      %p169 = scmp.eq.s32.totalorder %s14, 0
      %p170 = por %p168, %p169
      %p171 = scmp.ne.s32.totalorder %s160, %s163
      %p172 = scmp.eq.s32.totalorder %s19, 1
      %p173 = por %p171, %p172
      %p174 = scmp.ne.s32.totalorder %s163, %s164
      %p175 = scmp.eq.s32.totalorder %s19, 0
      %p176 = por %p174, %p175
      %p177 = scmp.ne.s32.totalorder %s163, %s164
      %p178 = scmp.eq.s32.totalorder %s20, 1
      %p179 = por %p177, %p178
      %p181 = scmp.ne.s32.totalorder %s164, %s180
      %p182 = scmp.eq.s32.totalorder %s20, 0
      %p183 = por %p181, %p182
      %p184 = scmp.le.s32.totalorder 1, %s14
      %p185 = scmp.lt.s32.totalorder %s14, 3
      %p186 = pnand %p184, %p185
      %p187 = pneg %p186
      // Predicated region
      $region9: #{tpu_custom_call.1} parent=5 // pred_check
        _
      $region10: #{tpu_custom_call.1} parent=5 // pred_check_branch
        %189 = sbr.rel (%p186) target = $region12
      $region11: #{tpu_custom_call.1} parent=5 // pred_region
        %s190 = ssub.s32 %s14, 1
        // Predicated region
        $region13: #{tpu_custom_call.1} parent=11 // pred_check
          %p191 = pneg %p80
        $region14: #{tpu_custom_call.1} parent=11 // pred_check_branch
          %193 = sbr.rel (%p191) target = $region16
        $region15: #{tpu_custom_call.1} parent=11 // pred_region
          %p194 = scmp.lt.s32.totalorder %s24, 0
          %s195 = scalar_select %p194, %s24, 0
          %s196 = smul.addr %s195, 8
          %s197 = scalar_lea.vmem %s1, %s196
        $region16: #{tpu_custom_call.1} parent=11 // pred_fallthru
          _
        // Predicated region
        $region17: #{tpu_custom_call.1} parent=11 // pred_check
          %p198 = pneg %p106
        $region18: #{tpu_custom_call.1} parent=11 // pred_check_branch
          %200 = sbr.rel (%p198) target = $region20
        $region19: #{tpu_custom_call.1} parent=11 // pred_region
          %p201 = scmp.lt.s32.totalorder %s24, 0
          %s202 = scalar_select %p201, %s24, 0
          %s203 = smul.addr %s202, 8
          %s204 = scalar_lea.vmem %s2, %s203
        $region20: #{tpu_custom_call.1} parent=11 // pred_fallthru
          _
        // Predicated region
        $region21: #{tpu_custom_call.1} parent=11 // pred_check
          %p205 = pneg %p127
        $region22: #{tpu_custom_call.1} parent=11 // pred_check_branch
          %207 = sbr.rel (%p205) target = $region24
        $region23: #{tpu_custom_call.1} parent=11 // pred_region
          _
        $region24: #{tpu_custom_call.1} parent=11 // pred_fallthru
          _
        // Predicated region
        $region25: #{tpu_custom_call.1} parent=11 // pred_check
          %p208 = pneg %p148
        $region26: #{tpu_custom_call.1} parent=11 // pred_check_branch
          %210 = sbr.rel (%p208) target = $region28
        $region27: #{tpu_custom_call.1} parent=11 // pred_region
          _
        $region28: #{tpu_custom_call.1} parent=11 // pred_fallthru
          _
      $region12: #{tpu_custom_call.1} parent=5 // pred_fallthru
        _
      %p211 = scmp.lt.s32.totalorder %s14, 2
      // Predicated region
      $region29: #{tpu_custom_call.1} parent=5 // pred_check
        %p212 = pneg %p211
      $region30: #{tpu_custom_call.1} parent=5 // pred_check_branch
        %214 = sbr.rel (%p212) target = $region32
      $region31: #{tpu_custom_call.1} parent=5 // pred_region
        // Predicated region
        $region33: #{tpu_custom_call.1} parent=31 // pred_check
          %p215 = pneg %p48
        $region34: #{tpu_custom_call.1} parent=31 // pred_check_branch
          %217 = sbr.rel (%p215) target = $region36
        $region35: #{tpu_custom_call.1} parent=31 // pred_region
          %p218 = scmp.lt.s32.totalorder %s21, 1
          %s219 = scalar_select %p218, %s21, 1
          %p220 = scmp.lt.s32.totalorder %s22, 0
          %s221 = scalar_select %p220, %s22, 0
          %s222 = sadd.s32 %s221, %s219
          %s223 = smul.addr %s222, 8
          %s224 = scalar_lea.vmem %s0, %s223
        $region36: #{tpu_custom_call.1} parent=31 // pred_fallthru
          _
      $region32: #{tpu_custom_call.1} parent=5 // pred_fallthru
        _
      %p225 = scmp.le.s32.totalorder 1, %s14
      %p226 = scmp.lt.s32.totalorder %s14, 3
      %p227 = pnand %p225, %p226
      %p228 = pneg %p227
      // Predicated region
      $region37: #{tpu_custom_call.1} parent=5 // pred_check
        _
      $region38: #{tpu_custom_call.1} parent=5 // pred_check_branch
        %230 = sbr.rel (%p227) target = $region40
      $region39: #{tpu_custom_call.1} parent=5 // pred_region
        %s231 = ssub.s32 %s14, 1
        %p232 = scmp.lt.s32.totalorder %s23, 1
        %s233 = scalar_select %p232, %s23, 1
        %p234 = scmp.lt.s32.totalorder %s24, 0
        %s235 = scalar_select %p234, %s24, 0
        %s236 = sadd.s32 %s235, %s233
        %s237 = smul.addr %s236, 8
        %s238 = scalar_lea.vmem %s0, %s237
        %p239 = pneg %p54
        %p240 = pneg %p51
        %p241 = scmp.lt.s32.totalorder %s24, 0
        %s242 = scalar_select %p241, %s24, 0
        %s243 = smul.addr %s242, 8
        %s244 = scalar_lea.vmem %s1, %s243
        %p245 = pneg %p80
        %p246 = pneg %p77
        %p247 = scmp.lt.s32.totalorder %s24, 0
        %s248 = scalar_select %p247, %s24, 0
        %s249 = smul.addr %s248, 8
        %s250 = scalar_lea.vmem %s2, %s249
        %p251 = pneg %p106
        %p252 = pneg %p103
        %p253 = pneg %p127
        %p254 = pneg %p124
        %p255 = pneg %p148
        %p256 = pneg %p145
        %p257 = pneg %p176
        %p258 = pneg %p173
        %s259 = sand.u32 %s163, 1
        %s260 = scalar_lea.sflag [#allocation3], %s259
        %s261 = sand.u32 %s163, 1
        %s262 = smul.addr %s261, 8
        %s263 = scalar_lea.vmem [#allocation2], %s262
        %p264 = scmp.lt.s32.totalorder %s23, 1
        %s265 = scalar_select %p264, %s23, 1
        %p266 = scmp.lt.s32.totalorder %s24, 0
        %s267 = scalar_select %p266, %s24, 0
        %s268 = sadd.s32 %s267, %s265
        %s269 = smul.addr %s268, 8
        %s270 = scalar_lea.vmem %s0, %s269
        %p271 = scmp.lt.s32.totalorder %s24, 0
        %s272 = scalar_select %p271, %s24, 0
        %s273 = smul.addr %s272, 8
        %s274 = scalar_lea.vmem %s1, %s273
        %p275 = scmp.lt.s32.totalorder %s24, 0
        %s276 = scalar_select %p275, %s24, 0
        %s277 = smul.addr %s276, 8
        %s278 = scalar_lea.vmem %s2, %s277
        %v279 = vld [vmem:[%s270] sm:$0xff]
        %v280 = vlaneseq
        %v281 = vand.u32 %v280, 127
        %v282 = vld [vmem:[%s3] sm:$0xff]
        %v283 = vld [vmem:[%s4] sm:$0x1]
        %284 = vrot.lane.b32.xlu0 %v279, 16
        %v285 = vpop.permute.xlu0 %284
        %vm286 = vcmp.lt.s32.totalorder %v281, 16
        %v287 = vrot.slane %v285, 7
        %vm288 = vcmp.eq.s32.totalorder %v282, 0
        %v289 = vsel %vm288, 1, 0
        %290 = vset.pattern.permute.xlu0 0
        %291 = vperm.xlu0 %290, %v289
        %v292 = vpop.permute.xlu0 %291
        %vm293 = vcmp.eq.s32.totalorder %v292, 1
        %v294 = vsel %vm293, 0.0, %v287
        %v295 = vsel %vm286, %v294, %v285
        %296 = vrot.lane.b32.xlu0 %v279, 112
        %v297 = vpop.permute.xlu0 %296
        %vm298 = vcmp.ge.s32.totalorder %v281, 112
        %v299 = vrot.slane %v297, 1
        %vm300 = vcmp.eq.s32.totalorder %v282, 1
        %v301 = vsel %vm300, 1, 0
        %302 = vset.pattern.permute.xlu0 0
        %303 = vperm.xlu0 %302, %v301
        %v304 = vpop.permute.xlu0 %303
        %vm305 = vcmp.eq.s32.totalorder %v304, 1
        %v306 = vsel %vm305, 0.0, %v299
        %v307 = vsel %vm298, %v306, %v297
        %v308 = vld [vmem:[%s274] sm:$0xff]
        %310 = vset.pattern.permute.xlu0 0
        %311 = vperm.xlu0 %310, %v308
        %v312 = vpop.permute.xlu0 %311
        %v314 = vmul.f32 %v295, %v312
        %s315 = scalar_lea.vmem %s274, 24
        %v316 = vld [vmem:[%s315] sm:$0xff]
        %318 = vset.pattern.permute.xlu0 0
        %319 = vperm.xlu0 %318, %v316
        %v320 = vpop.permute.xlu0 %319
        %v322 = vmul.f32 %v279, %v320
        %v323 = vadd.f32 %v314, %v322
        %s324 = scalar_lea.vmem %s274, 48
        %v325 = vld [vmem:[%s324] sm:$0xff]
        %327 = vset.pattern.permute.xlu0 0
        %328 = vperm.xlu0 %327, %v325
        %v329 = vpop.permute.xlu0 %328
        %v331 = vmul.f32 %v307, %v329
        %v332 = vadd.f32 %v323, %v331
        %s333 = scalar_lea.vmem %s274, 8
        %v334 = vld [vmem:[%s333] sm:$0xff]
        %336 = vset.pattern.permute.xlu0 0
        %337 = vperm.xlu0 %336, %v334
        %v338 = vpop.permute.xlu0 %337
        %v340 = vmul.f32 %v295, %v338
        %s341 = scalar_lea.vmem %s274, 32
        %v342 = vld [vmem:[%s341] sm:$0xff]
        %344 = vset.pattern.permute.xlu0 0
        %345 = vperm.xlu0 %344, %v342
        %v346 = vpop.permute.xlu0 %345
        %v348 = vmul.f32 %v279, %v346
        %v349 = vadd.f32 %v340, %v348
        %s350 = scalar_lea.vmem %s274, 56
        %v351 = vld [vmem:[%s350] sm:$0xff]
        %353 = vset.pattern.permute.xlu0 0
        %354 = vperm.xlu0 %353, %v351
        %v355 = vpop.permute.xlu0 %354
        %v357 = vmul.f32 %v307, %v355
        %v358 = vadd.f32 %v349, %v357
        %s359 = scalar_lea.vmem %s274, 16
        %v360 = vld [vmem:[%s359] sm:$0xff]
        %362 = vset.pattern.permute.xlu0 0
        %363 = vperm.xlu0 %362, %v360
        %v364 = vpop.permute.xlu0 %363
        %v366 = vmul.f32 %v295, %v364
        %s367 = scalar_lea.vmem %s274, 40
        %v368 = vld [vmem:[%s367] sm:$0xff]
        %370 = vset.pattern.permute.xlu0 0
        %371 = vperm.xlu0 %370, %v368
        %v372 = vpop.permute.xlu0 %371
        %v374 = vmul.f32 %v279, %v372
        %v375 = vadd.f32 %v366, %v374
        %s376 = scalar_lea.vmem %s274, 64
        %v377 = vld [vmem:[%s376] sm:$0xff]
        %379 = vset.pattern.permute.xlu0 0
        %380 = vperm.xlu0 %379, %v377
        %v381 = vpop.permute.xlu0 %380
        %v383 = vmul.f32 %v307, %v381
        %v384 = vadd.f32 %v375, %v383
        %v385 = vld [vmem:[%s278] sm:$0xff]
        %387 = vset.pattern.permute.xlu0 0
        %388 = vperm.xlu0 %387, %v385
        %v389 = vpop.permute.xlu0 %388
        %v391 = vadd.f32 %v358, %v389
        %vm392 = vcmp.eq.s32.totalorder %v283, 0
        %393 = vrot.lane.b32.xlu0 %v332, 1
        %v394 = vpop.permute.xlu0 %393
        %v395 = vsel %vm392, 1, 0
        %v396 = vlaneseq
        %v397 = vshrl.u32 %v396, 7
        %v398 = vsub.s32 0, %v397
        %v399 = vrot.slane %v395, %v398
        %vm400 = vcmp.eq.s32.totalorder %v399, 1
        %v401 = vsel %vm400, 0.0, %v394
        %v402 = vadd.f32 %v391, %v401
        %vm403 = vcmp.eq.s32.totalorder %v283, 15
        %404 = vrot.lane.b32.xlu0 %v384, 127
        %v405 = vpop.permute.xlu0 %404
        %v406 = vsel %vm403, 1, 0
        %v407 = vlaneseq
        %v408 = vshrl.u32 %v407, 7
        %v409 = vsub.s32 0, %v408
        %v410 = vrot.slane %v406, %v409
        %vm411 = vcmp.eq.s32.totalorder %v410, 1
        %v412 = vsel %vm411, 0.0, %v405
        %v413 = vadd.f32 %v402, %v412
        %414 = vst [vmem:[%s263] sm:$0xff] %v413
        %s415 = sand.u32 %s163, 1
        %s416 = scalar_lea.sflag [#allocation3], %s415
        %s417 = sand.u32 %s163, 1
        %s418 = smul.addr %s417, 8
        %s419 = scalar_lea.vmem [#allocation2], %s418
        // Predicated region
        $region41: #{tpu_custom_call.1} parent=39 // pred_check
          %p420 = pneg %p173
        $region42: #{tpu_custom_call.1} parent=39 // pred_check_branch
          %422 = sbr.rel (%p420) target = $region44
        $region43: #{tpu_custom_call.1} parent=39 // pred_region
          %s424 = ssub.s32 128, 128
          %425 = vsyncadd %s416, %s424
          %s426 = sadd.s32 %s24, %s23
          %s427 = smul.addr %s426, 128
          %s428 = scalar_lea.hbm %s5, %s427
          %s430 = sshll.u32 %s419, 4
          %s431 = int_to_ptr.vmem [resolvable:$true] %s430
          %433 = dma.vmem_to_hbm [thread:$0]  %s431, 128, %s428, %s416
        $region44: #{tpu_custom_call.1} parent=39 // pred_fallthru
          _
      $region40: #{tpu_custom_call.1} parent=5 // pred_fallthru
        _
      %p434 = scmp.le.s32.totalorder 2, %s14
      // Predicated region
      $region45: #{tpu_custom_call.1} parent=5 // pred_check
        %p435 = pneg %p434
      $region46: #{tpu_custom_call.1} parent=5 // pred_check_branch
        %437 = sbr.rel (%p435) target = $region48
      $region47: #{tpu_custom_call.1} parent=5 // pred_region
        %s438 = ssub.s32 %s14, 2
        // Predicated region
        $region49: #{tpu_custom_call.1} parent=47 // pred_check
          %p439 = pneg %p179
        $region50: #{tpu_custom_call.1} parent=47 // pred_check_branch
          %441 = sbr.rel (%p439) target = $region52
        $region51: #{tpu_custom_call.1} parent=47 // pred_region
          %s442 = sand.u32 %s164, 1
          %s443 = scalar_lea.sflag [#allocation3], %s442
          %s444 = sand.u32 %s164, 1
          %s445 = smul.addr %s444, 8
          %s446 = scalar_lea.vmem [#allocation2], %s445
          %447 = dma.done %s443, 128
        $region52: #{tpu_custom_call.1} parent=47 // pred_fallthru
          _
      $region48: #{tpu_custom_call.1} parent=5 // pred_fallthru
        _
    $region6: #{tpu_custom_call.1} parent=1 // loop_footer
      %s18 = sadd.s32 1, %s14
    $region7: #{tpu_custom_call.1} parent=1 // loop_footer_branch
      %13 = sbr.rel target = $region3
    $region8: #{tpu_custom_call.1} parent=1 // loop_exit
      _
    %448 = vsyncpa [#allocation3], 1
    %s449 = scalar_lea.sflag [#allocation3], 1
    %450 = vsyncpa %s449, 1

</llo_original>
